<compile_context>
chip_gen: v7x
topology: tpu7x:2x2x1
jax: 0.10.0
libtpu: 0.0.40
codegen_flags: <defaults>
</compile_context>

<pallas_src>
import functools

import numpy as np
import jax
import jax.numpy as jnp
from jax.experimental import pallas as pl
from jax.experimental.pallas import tpu as pltpu

_LANE = 128
_SUBLANE = 8
_MAX_BLOCK_BYTES = 8 << 20   # per-(c_tile, HW) f32 block; x4 for double-buffered in+out


def _ref_adjust_sharpness(img, factor):
    """Pure-JAX reference mirroring torchvision's adjust_sharpness (float path).

    Also used as the fallback for planes too large for the one-plane-per-block
    Pallas kernel (see TODO in adjust_sharpness_pallas)."""
    x = img.astype(jnp.float32)
    N, C, H, W = x.shape
    if H <= 2 or W <= 2:
        return img
    k = jnp.array([[1.0, 1.0, 1.0], [1.0, 5.0, 1.0], [1.0, 1.0, 1.0]],
                  dtype=jnp.float32) / 13.0
    interior = sum(
        k[dy, dx] * x[:, :, dy:dy + H - 2, dx:dx + W - 2]
        for dy in range(3) for dx in range(3)
    )
    degenerate = x.at[:, :, 1:-1, 1:-1].set(interior)
    out = jnp.clip(factor * x + (1.0 - factor) * degenerate, 0.0, 1.0)
    return out.astype(img.dtype)


def _sharpen_kernel(img_ref, m_ref, out_ref, *, w, n):
    """One grid step over a (c_tile, n) slab of flattened channel planes.

    w: image width; n: flattened (lane-axis) plane length.
    m_ref holds (1 - factor)/13 * interior_mask, so torchvision's whole formula
    collapses to  out = clip(x + m * (box3x3 - 9*x), 0, 1).
    """
    x = img_ref[...].astype(jnp.float32)               # (c_tile, n), lane-dense
    m = m_ref[...]                                      # (1, n)

    # Separable 3x3 box sum via flat-axis rotates (XLU slot): +-1 = left/right,
    # +-w = up/down.  Wrap-around only lands on border pixels, which m zeroes.
    row = x + pltpu.roll(x, shift=1, axis=1) + pltpu.roll(x, shift=n - 1, axis=1)
    box = row + pltpu.roll(row, shift=w, axis=1) + pltpu.roll(row, shift=n - w, axis=1)

    # blurred = (box + 4x)/13 ;  out = x + (1-f)*interior*(blurred - x)
    #         = x + ((1-f)/13 * interior) * (box - 9x)
    out = x + m * (box - 9.0 * x)
    out_ref[...] = jnp.clip(out, 0.0, 1.0).astype(out_ref.dtype)


def adjust_sharpness_pallas(img, sharpen_factor):
    """img: (N, C, H, W) float array in [0, 1]. Returns same shape/dtype."""
    N, C, H, W = img.shape
    if H <= 2 or W <= 2:
        return img                       # torchvision: identity for degenerate sizes

    P = N * C
    HW = H * W
    # Lane-dense flat plane.  When HW is a multiple of 128 (common case) there is no
    # padding and no output slice at all; otherwise pad only the lane axis, since the
    # in-kernel rolls need an aligned flat axis.
    HW_pad = HW if HW % _LANE == 0 else pl.cdiv(HW, _LANE) * _LANE
    plane_bytes = HW_pad * 4

    try:
        vmem_cap = int(pltpu.get_tpu_info().vmem_capacity_bytes)
    except Exception:
        vmem_cap = 64 << 20              # conservative: v7x per-TC VMEM

    # TODO(synk): intra-plane (HW-axis) tiling with a one-image-row halo so planes
    # larger than ~VMEM/40 also run in the kernel; until then use the XLA path.
    if (4 * _SUBLANE + 2) * plane_bytes > (vmem_cap * 3) // 4:
        return _ref_adjust_sharpness(img, sharpen_factor)

    # --- planes per grid step (c_tile), sublane-aligned --------------------------
    block_budget = min(_MAX_BLOCK_BYTES, vmem_cap // 8)
    c_tile_max = (block_budget // plane_bytes) // _SUBLANE * _SUBLANE
    c_tile_max = max(_SUBLANE, min(pl.cdiv(P, _SUBLANE) * _SUBLANE, c_tile_max))
    steps = pl.cdiv(P, c_tile_max)
    if steps == 1 and P > _SUBLANE:
        steps = 2                        # give v7x's 2 TensorCores something to split
    if steps > 1 and steps % 2 == 1:
        steps += 1                       # prefer an even step count for the 2-TC split
    c_tile = min(c_tile_max, pl.cdiv(pl.cdiv(P, steps), _SUBLANE) * _SUBLANE)
    grid = (pl.cdiv(P, c_tile),)         # P need not divide: edge-block rows are masked

    # --- inputs ------------------------------------------------------------------
    x = img.reshape(P, HW)
    if HW_pad != HW:
        x = jnp.pad(x, ((0, 0), (0, HW_pad - HW)))

    # (1-f)/13 * interior mask, precomputed once on a tiny (1, HW) array so the
    # kernel's per-element tail is a single multiply-add (+ clip).
    rr = jnp.arange(H)
    cc = jnp.arange(W)
    interior = (((rr >= 1) & (rr <= H - 2))[:, None]
                & ((cc >= 1) & (cc <= W - 2))[None, :]).reshape(1, HW)
    m_scaled = interior.astype(jnp.float32) * jnp.float32((1.0 - sharpen_factor) / 13.0)
    if HW_pad != HW:
        m_scaled = jnp.pad(m_scaled, ((0, 0), (0, HW_pad - HW)))

    block_bytes = c_tile * plane_bytes
    vmem_limit = int(min(vmem_cap,
                         max(16 << 20, 4 * block_bytes + 2 * plane_bytes + (1 << 20))))

    kernel = functools.partial(_sharpen_kernel, w=W, n=HW_pad)
    out = pl.pallas_call(
        kernel,
        out_shape=jax.ShapeDtypeStruct((P, HW_pad), img.dtype),
        grid_spec=pltpu.PrefetchScalarGridSpec(
            num_scalar_prefetch=0,
            grid=grid,
            in_specs=[
                pl.BlockSpec((c_tile, HW_pad), lambda i: (i, 0)),    # image planes
                pl.BlockSpec((1, HW_pad), lambda i: (0, 0)),         # scaled interior mask
            ],
            out_specs=pl.BlockSpec((c_tile, HW_pad), lambda i: (i, 0)),
        ),
        input_output_aliases={0: 0},     # reuse the flattened temp as the output buffer
        compiler_params=pltpu.CompilerParams(
            dimension_semantics=("parallel",),
            vmem_limit_bytes=vmem_limit),
    )(x, m_scaled)

    if HW_pad != HW:
        out = out[:, :HW]
    return out.reshape(N, C, H, W)


class SharpenPallas:
    """JAX/Pallas equivalent of the PyTorch Sharpen transform."""

    def __init__(self, sharpen_factor_range=(0.0, 1.0), seed=0):
        self.sharpen_factor_range = sharpen_factor_range
        self._rng = np.random.default_rng(seed)
        self.current_sharpen_factor = None
        self.step()

    def step(self):
        lo, hi = self.sharpen_factor_range
        self.current_sharpen_factor = float(self._rng.uniform(lo, hi))

    def __call__(self, img, mask):
        img = adjust_sharpness_pallas(img, self.current_sharpen_factor)
        return (img, mask)


if __name__ == "__main__":
    key = jax.random.PRNGKey(0)
    k_img, k_mask, k2, k3 = jax.random.split(key, 4)

    # NCHW inputs, as in the PyTorch module.
    img = jax.random.uniform(k_img, (2, 4, 16, 16), dtype=jnp.float32)
    mask = (jax.random.uniform(k_mask, (2, 1, 16, 16)) > 0.5).astype(jnp.float32)

    transform = SharpenPallas(sharpen_factor_range=(0.0, 1.0), seed=0)
    out_img, out_mask = transform(img, mask)
    out_img = jax.block_until_ready(out_img)
    out_mask = jax.block_until_ready(out_mask)

    ref = _ref_adjust_sharpness(img, transform.current_sharpen_factor)
    assert out_img.shape == img.shape and out_img.dtype == img.dtype
    assert jnp.allclose(out_img, ref, atol=1e-5, rtol=1e-5)
    assert jnp.array_equal(out_mask, mask)

    # Edge-block path: plane count (3) not a multiple of the 8-sublane block,
    # HW = 16*24 = 384 lane-aligned, so no padding / slicing anywhere.
    img2 = jax.random.uniform(k2, (1, 3, 16, 24), dtype=jnp.float32)
    out2 = jax.block_until_ready(adjust_sharpness_pallas(img2, 0.3))
    assert jnp.allclose(out2, _ref_adjust_sharpness(img2, 0.3), atol=1e-5, rtol=1e-5)

    # Lane-pad fallback path: H*W = 108 is not a multiple of 128.
    img3 = jax.random.uniform(k3, (1, 3, 9, 12), dtype=jnp.float32)
    out3 = jax.block_until_ready(adjust_sharpness_pallas(img3, 0.7))
    assert jnp.allclose(out3, _ref_adjust_sharpness(img3, 0.7), atol=1e-5, rtol=1e-5)

    print("KERNEL_OK")
</pallas_src>

<mosaic_0001>
module attributes {stable_mosaic.version = 11 : i64} {
  func.func @_sharpen_kernel(%arg0: i32, %arg1: memref<8x256xf32, #tpu.memory_space<vmem>>, %arg2: memref<1x256xf32, #tpu.memory_space<vmem>>, %arg3: memref<8x256xf32, #tpu.memory_space<vmem>>) attributes {dimension_semantics = [#tpu.dimension_semantics<parallel>], iteration_bounds = array<i64: 1>, scalar_prefetch = 0 : i64, scratch_operands = 0 : i64, tpu.core_type = #tpu.core_type<tc>, window_params = [{transform_indices = @transform_0, window_bounds = array<i64: 8, 256>}, {pipeline_mode = #tpu.pipeline_mode<synchronous>, transform_indices = @transform_1, window_bounds = array<i64: 1, 256>}, {transform_indices = @transform_2, window_bounds = array<i64: 8, 256>}]} {
    %c0 = arith.constant 0 : index
    %c0_0 = arith.constant 0 : index
    %0 = vector.load %arg1[%c0, %c0_0] : memref<8x256xf32, #tpu.memory_space<vmem>>, vector<8x256xf32>
    %c0_1 = arith.constant 0 : index
    %c0_2 = arith.constant 0 : index
    %1 = vector.load %arg2[%c0_1, %c0_2] : memref<1x256xf32, #tpu.memory_space<vmem>>, vector<1x256xf32>
    %c1_i32 = arith.constant 1 : i32
    %2 = tpu.dynamic_rotate %0 by %c1_i32 dim 1 : vector<8x256xf32>, i32 -> vector<8x256xf32>
    %3 = arith.addf %0, %2 : vector<8x256xf32>
    %c255_i32 = arith.constant 255 : i32
    %4 = tpu.dynamic_rotate %0 by %c255_i32 dim 1 : vector<8x256xf32>, i32 -> vector<8x256xf32>
    %5 = arith.addf %3, %4 : vector<8x256xf32>
    %c16_i32 = arith.constant 16 : i32
    %6 = tpu.dynamic_rotate %5 by %c16_i32 dim 1 : vector<8x256xf32>, i32 -> vector<8x256xf32>
    %7 = arith.addf %5, %6 : vector<8x256xf32>
    %c240_i32 = arith.constant 240 : i32
    %8 = tpu.dynamic_rotate %5 by %c240_i32 dim 1 : vector<8x256xf32>, i32 -> vector<8x256xf32>
    %9 = arith.addf %7, %8 : vector<8x256xf32>
    %cst = arith.constant 9.000000e+00 : f32
    %10 = vector.broadcast %cst : f32 to vector<8x256xf32>
    %11 = arith.mulf %10, %0 : vector<8x256xf32>
    %12 = arith.subf %9, %11 : vector<8x256xf32>
    %13 = vector.broadcast %1 : vector<1x256xf32> to vector<8x256xf32>
    %14 = arith.mulf %13, %12 : vector<8x256xf32>
    %15 = arith.addf %0, %14 : vector<8x256xf32>
    %cst_3 = arith.constant 0.000000e+00 : f32
    %cst_4 = arith.constant 1.000000e+00 : f32
    %16 = vector.broadcast %cst_3 : f32 to vector<8x256xf32>
    %17 = arith.maximumf %16, %15 : vector<8x256xf32>
    %18 = vector.broadcast %cst_4 : f32 to vector<8x256xf32>
    %19 = arith.minimumf %18, %17 : vector<8x256xf32>
    %c0_5 = arith.constant 0 : index
    %c0_6 = arith.constant 0 : index
    %20 = vector.load %arg3[%c0_5, %c0_6] : memref<8x256xf32, #tpu.memory_space<vmem>>, vector<8x256xf32>
    tpu.vector_store %arg3[%c0_5, %c0_6], %19 {strides = array<i32>} : memref<8x256xf32, #tpu.memory_space<vmem>>, vector<8x256xf32>,
    return
  }
  func.func @transform_0(%arg0: i32) -> (i32, i32) {
    %c0_i32 = arith.constant 0 : i32
    %c0_i32_0 = arith.constant 0 : i32
    return %arg0, %c0_i32 : i32, i32
  }
  func.func @transform_1(%arg0: i32) -> (i32, i32) {
    %c0_i32 = arith.constant 0 : i32
    %c0_i32_0 = arith.constant 0 : i32
    %c0_i32_1 = arith.constant 0 : i32
    return %c0_i32, %c0_i32_0 : i32, i32
  }
  func.func @transform_2(%arg0: i32) -> (i32, i32) {
    %c0_i32 = arith.constant 0 : i32
    %c0_i32_0 = arith.constant 0 : i32
    return %arg0, %c0_i32 : i32, i32
  }
}

</mosaic_0001>

<llo_original>
// kernel: tpu_custom_call.1
$region0: #{tpu_custom_call.1}
  #allocation0 [shape = 'u32[]', space=smem, size = 0x4, offset = 0x4, fixed_abs, tag = 'smem constant byte address 0x4 - core index']
  #allocation1 [shape = 'u32[144,128]{1,0:T(1,128)}', space=vmem, size = 0x12000, scoped, tag = 'internal scratch']
  %s0 = inlined_call_operand.hbm [shape: f32[8,256], index: 0, kind: input, shape index: {}, may-alias: {0,2}]
  %s1 = inlined_call_operand.vmem [shape: f32[1,256], index: 1, kind: input, shape index: {}]
  %s2 = inlined_call_operand.hbm [shape: f32[8,256], index: 2, kind: output, shape index: {}, may-alias: {0,2}]
  %s3 = sld [smem:[#allocation0]]
  $region22: #{tpu_custom_call.1} parent=0
    _
  %s5 = ssub.s32 1, %s3
  %s6 = scalar_select 0, %s5, %s3
  $region1: #{tpu_custom_call.1} parent=0
    #allocation2 [shape = 'u8[8192]{0}', space=vmem, size = 0x2000, scoped, tag = 'input window, operand 0, single buffered']
    #allocation3 [shape = 's32[1]{0}', space=sflag, size = 0x4, scoped, tag = 'scoped memory for tpu_custom_call.1']
    #allocation4 [shape = 's32[1]{0}', space=sflag, size = 0x4, scoped, tag = 'scoped memory for tpu_custom_call.1']
    #allocation5 [shape = 'u8[8192]{0}', space=vmem, size = 0x2000, scoped, tag = 'output window, operand 0, single buffered']
    %7 = vsyncpa [#allocation3], 0
    %8 = vsyncpa [#allocation4], 0
    // Predicated region
    $region2: #{tpu_custom_call.1} parent=1 // pred_check
      _
    $region3: #{tpu_custom_call.1} parent=1 // pred_check_branch
      %10 = sbr.rel (0) target = $region5
    $region4: #{tpu_custom_call.1} parent=1 // pred_region
      %s12 = ssub.s32 256, 256
      %13 = vsyncadd [#allocation3], %s12
      %s15 = sshll.u32 [#allocation2], 4
      %s16 = int_to_ptr.vmem [resolvable:$true] %s15
      %18 = dma.hbm_to_vmem [thread:$0]  %s0, 256, %s16, [#allocation3]
    $region5: #{tpu_custom_call.1} parent=1 // pred_fallthru
      _
    // Predicated region
    $region6: #{tpu_custom_call.1} parent=1 // pred_check
      _
    $region7: #{tpu_custom_call.1} parent=1 // pred_check_branch
      %20 = sbr.rel (0) target = $region9
    $region8: #{tpu_custom_call.1} parent=1 // pred_region
      _
    $region9: #{tpu_custom_call.1} parent=1 // pred_fallthru
      _
    // Predicated region
    $region10: #{tpu_custom_call.1} parent=1 // pred_check
      _
    $region11: #{tpu_custom_call.1} parent=1 // pred_check_branch
      %22 = sbr.rel (0) target = $region13
    $region12: #{tpu_custom_call.1} parent=1 // pred_region
      %23 = dma.done [#allocation3], 256
    $region13: #{tpu_custom_call.1} parent=1 // pred_fallthru
      _
    %v24 = vld [vmem:[#allocation2] sm:$0xff]
    %v25 = vld [vmem:[#allocation2 + $0x8] sm:$0xff]
    %v26 = vld [vmem:[%s1] sm:$0x3]
    %27 = vrot.lane.b32.xlu0 %v24, 1
    %v28 = vpop.permute.xlu0 %27
    %29 = vrot.lane.b32.xlu0 %v25, 1
    %v30 = vpop.permute.xlu0 %29
    %v31 = vlaneseq
    %v32 = vand.u32 %v31, 127
    %vm33 = vcmp.lt.s32.totalorder %v32, 1
    %v34 = vsel %vm33, %v28, %v30
    %v35 = vsel %vm33, %v30, %v28
    %v36 = vadd.f32 %v24, %v35
    %v37 = vadd.f32 %v25, %v34
    %38 = vrot.lane.b32.xlu0 %v24, 127
    %v39 = vpop.permute.xlu0 %38
    %40 = vrot.lane.b32.xlu0 %v25, 127
    %v41 = vpop.permute.xlu0 %40
    %vm42 = vcmp.lt.s32.totalorder %v32, 127
    %v43 = vsel %vm42, %v39, %v41
    %v44 = vsel %vm42, %v41, %v39
    %v45 = vadd.f32 %v36, %v43
    %v46 = vadd.f32 %v37, %v44
    %47 = vrot.lane.b32.xlu0 %v45, 16
    %v48 = vpop.permute.xlu0 %47
    %49 = vrot.lane.b32.xlu0 %v46, 16
    %v50 = vpop.permute.xlu0 %49
    %vm51 = vcmp.lt.s32.totalorder %v32, 16
    %v52 = vsel %vm51, %v48, %v50
    %v53 = vsel %vm51, %v50, %v48
    %v54 = vadd.f32 %v45, %v53
    %v55 = vadd.f32 %v46, %v52
    %56 = vrot.lane.b32.xlu0 %v45, 112
    %v57 = vpop.permute.xlu0 %56
    %58 = vrot.lane.b32.xlu0 %v46, 112
    %v59 = vpop.permute.xlu0 %58
    %vm60 = vcmp.lt.s32.totalorder %v32, 112
    %v61 = vsel %vm60, %v57, %v59
    %v62 = vsel %vm60, %v59, %v57
    %v63 = vadd.f32 %v54, %v61
    %v64 = vadd.f32 %v55, %v62
    %v65 = vmul.f32 %v24, 9.0
    %v66 = vmul.f32 %v25, 9.0
    %v67 = vsub.f32 %v63, %v65
    %v68 = vsub.f32 %v64, %v66
    %v70 = vlaneseq
    %v71 = vshrl.u32 %v70, 7
    %v72 = vsub.s32 0, %v71
    %v73 = vrot.slane %v26, %v72
    %v74 = vlaneseq
    %v75 = vshrl.u32 %v74, 7
    %v76 = vsub.s32 1, %v75
    %v77 = vrot.slane %v26, %v76
    %v80 = vmul.f32 %v73, %v67
    %v81 = vmul.f32 %v77, %v68
    %v82 = vadd.f32 %v24, %v80
    %v83 = vadd.f32 %v25, %v81
    %v84 = vmax.f32 %v82, 0.0
    %v85 = vmax.f32 %v83, 0.0
    %v86 = vmin.f32 %v84, 1.0
    %v87 = vmin.f32 %v85, 1.0
    %88 = vst [vmem:[#allocation5] sm:$0xff] %v86
    %89 = vst [vmem:[#allocation5 + $0x8] sm:$0xff] %v87
    // Predicated region
    $region14: #{tpu_custom_call.1} parent=1 // pred_check
      _
    $region15: #{tpu_custom_call.1} parent=1 // pred_check_branch
      %91 = sbr.rel (0) target = $region17
    $region16: #{tpu_custom_call.1} parent=1 // pred_region
      %s93 = ssub.s32 256, 256
      %94 = vsyncadd [#allocation4], %s93
      %s96 = sshll.u32 [#allocation5], 4
      %s97 = int_to_ptr.vmem [resolvable:$true] %s96
      %99 = dma.vmem_to_hbm [thread:$0]  %s97, 256, %s2, [#allocation4]
    $region17: #{tpu_custom_call.1} parent=1 // pred_fallthru
      _
    // Predicated region
    $region18: #{tpu_custom_call.1} parent=1 // pred_check
      _
    $region19: #{tpu_custom_call.1} parent=1 // pred_check_branch
      %101 = sbr.rel (0) target = $region21
    $region20: #{tpu_custom_call.1} parent=1 // pred_region
      %102 = dma.done [#allocation4], 256
    $region21: #{tpu_custom_call.1} parent=1 // pred_fallthru
      _
    %103 = vsyncpa [#allocation3], 1
    %104 = vsyncpa [#allocation4], 1

</llo_original>
